<compile_context>
chip_gen: v7x
topology: tpu7x:2x2x1
jax: 0.10.0
libtpu: 0.0.40
codegen_flags: <defaults>
</compile_context>

<pallas_src>
import functools
import math

import jax
import jax.numpy as jnp
from jax import lax
from jax.experimental import pallas as pl
from jax.experimental.pallas import tpu as pltpu


def _series_decomp_kernel(x_ref, res_ref, mean_ref, *, kernel_size):
    # x_ref: (1, L, TC) VMEM tile: one (batch-eff) element, one lane tile.
    L = x_ref.shape[1]
    C = x_ref.shape[2]
    pad = (kernel_size - 1) // 2

    x = x_ref[0].astype(jnp.float32)                       # (L, C) f32
    row = lax.broadcasted_iota(jnp.int32, (L, C), 0)        # time index per row

    # Inclusive prefix sum along time: log2(L) XLU rolls + masked adds,
    # independent of kernel_size.
    s = x
    d = 1
    while d < L:
        rolled = pltpu.roll(s, shift=d, axis=0)              # rolled[t] = s[(t-d) % L]
        s = s + jnp.where(row >= d, rolled, 0.0)
        d *= 2

    total = s[L - 1:L, :]                                    # (1, C) grand total

    # upper[t] = S[min(t+pad, L-1)]
    if pad > 0:
        shift_u = (-pad) % L
        up = s if shift_u == 0 else pltpu.roll(s, shift=shift_u, axis=0)
        upper = jnp.where(row >= L - pad, total, up)
    else:
        upper = s

    # lower[t] = S[t-pad-1] if t-pad-1 >= 0 else 0
    q = pad + 1
    shift_d = q % L
    dn = s if shift_d == 0 else pltpu.roll(s, shift=shift_d, axis=0)
    lower = jnp.where(row >= q, dn, 0.0)

    # Edge-replication corrections (only non-zero on the first/last pad rows).
    x0 = x[0:1, :]                                           # (1, C), broadcasts
    xl = x[L - 1:L, :]
    left_cnt = jnp.maximum(pad - row, 0).astype(jnp.float32)
    right_cnt = jnp.maximum(row + pad - (L - 1), 0).astype(jnp.float32)

    win = upper - lower + left_cnt * x0 + right_cnt * xl
    mean = win * (1.0 / kernel_size)
    res = x - mean                                           # subtract in f32

    mean_ref[0] = mean.astype(mean_ref.dtype)
    res_ref[0] = res.astype(res_ref.dtype)


def _pick_channel_tile(L, C, itemsize, *, budget_bytes=40 * 1024 * 1024,
                       n_live_f32=10):
    """Largest lane tile that divides C, stays a multiple of 128 lanes, and
    keeps the per-step working set — ~n_live_f32 live (L, tc) f32/i32
    temporaries plus double-buffered I/O (1 input + 2 outputs) — inside the
    VMEM budget on every generation (v7x has only 64 MiB/TC)."""
    if C % 128 != 0:
        return C  # last dim must be a multiple of 128 or the full extent
    max_elems = budget_bytes // (4 * n_live_f32 + 2 * 3 * itemsize)
    tc = C
    while tc % 256 == 0 and L * tc > max_elems:
        tc //= 2
    return tc


def series_decomp(x, kernel_size):
    """x: (B, L, C) float array. Returns (res, moving_mean), both (B, L, C)."""
    if kernel_size < 1 or kernel_size % 2 != 1:
        # Even k under-pads ((k-1)//2 per side) and AvgPool1d would change the
        # sequence length, breaking `x - moving_mean` in the PyTorch module.
        raise ValueError("series_decomp requires an odd kernel_size >= 1")

    B, L, C = x.shape
    itemsize = jnp.dtype(x.dtype).itemsize

    # Lane-density: for small / misaligned channel counts fold batch into the
    # lane dim (time stays on sublanes) so outputs are lane-dense.
    fold = (C < 128) and (C % 128 != 0) and (B > 1)
    if fold:
        x_eff = jnp.transpose(x, (1, 0, 2)).reshape(1, L, B * C)
        B_eff, C_eff = 1, B * C
    else:
        x_eff = x
        B_eff, C_eff = B, C

    tc = _pick_channel_tile(L, C_eff, itemsize)
    n_c = C_eff // tc

    kernel = functools.partial(_series_decomp_kernel, kernel_size=kernel_size)

    out_shape = (
        jax.ShapeDtypeStruct((B_eff, L, C_eff), x.dtype),  # residual
        jax.ShapeDtypeStruct((B_eff, L, C_eff), x.dtype),  # moving_mean
    )

    block = pl.BlockSpec((1, L, tc), lambda b, c: (b, 0, c))

    log2_l = max(1, math.ceil(math.log2(max(L, 2))))
    cost = pl.CostEstimate(
        flops=B * L * C * (2 * log2_l + 12),       # log-depth scan + fixups
        transcendentals=0,
        bytes_accessed=3 * B * L * C * itemsize,   # 1 read + 2 writes
    )

    res, mean = pl.pallas_call(
        kernel,
        out_shape=out_shape,
        grid_spec=pltpu.PrefetchScalarGridSpec(
            num_scalar_prefetch=0,
            grid=(B_eff, n_c),
            in_specs=[block],
            out_specs=(block, block),
        ),
        compiler_params=pltpu.CompilerParams(
            dimension_semantics=("parallel", "parallel"),
            vmem_limit_bytes=48 * 1024 * 1024,
        ),
        cost_estimate=cost,
    )(x_eff)

    if fold:
        res = jnp.transpose(res.reshape(L, B, C), (1, 0, 2))
        mean = jnp.transpose(mean.reshape(L, B, C), (1, 0, 2))
    return res, mean


def _reference(x, kernel_size):
    # Pure-JAX reference mirroring the PyTorch code exactly.
    pad = (kernel_size - 1) // 2
    front = jnp.repeat(x[:, 0:1, :], pad, axis=1)
    end = jnp.repeat(x[:, -1:, :], pad, axis=1)
    xp = jnp.concatenate([front, x, end], axis=1)  # (B, L+2p, C)
    L = x.shape[1]
    windows = jnp.stack([xp[:, j:j + L, :] for j in range(kernel_size)], axis=0)
    mean = jnp.mean(windows, axis=0)
    return x - mean, mean


if __name__ == "__main__":
    key = jax.random.PRNGKey(0)

    # Case 1: small channel count -> batch-into-lanes fold path.
    B, L, C, k = 2, 16, 8, 5
    x = jax.random.normal(key, (B, L, C), dtype=jnp.float32)
    res, mean = jax.block_until_ready(series_decomp(x, k))
    res_ref, mean_ref = _reference(x, k)
    assert res.shape == (B, L, C) and mean.shape == (B, L, C)
    assert jnp.allclose(mean, mean_ref, atol=1e-5, rtol=1e-5)
    assert jnp.allclose(res, res_ref, atol=1e-5, rtol=1e-5)

    # Case 2: lane-aligned channels (direct path), large window (k=25) to
    # exercise the log-depth prefix-sum / edge-clamp formulation.
    B2, L2, C2, k2 = 2, 32, 128, 25
    x2 = jax.random.normal(jax.random.PRNGKey(0), (B2, L2, C2), dtype=jnp.float32)
    res2, mean2 = jax.block_until_ready(series_decomp(x2, k2))
    res2_ref, mean2_ref = _reference(x2, k2)
    assert jnp.allclose(mean2, mean2_ref, atol=1e-5, rtol=1e-5)
    assert jnp.allclose(res2, res2_ref, atol=1e-5, rtol=1e-5)

    print("KERNEL_OK")
</pallas_src>

<mosaic_0001>
module attributes {stable_mosaic.version = 11 : i64} {
  func.func @_series_decomp_kernel(%arg0: i32, %arg1: i32, %arg2: memref<1x16x16xf32, #tpu.memory_space<vmem>>, %arg3: memref<1x16x16xf32, #tpu.memory_space<vmem>>, %arg4: memref<1x16x16xf32, #tpu.memory_space<vmem>>) attributes {dimension_semantics = [#tpu.dimension_semantics<parallel>, #tpu.dimension_semantics<parallel>], iteration_bounds = array<i64: 1, 1>, scalar_prefetch = 0 : i64, scratch_operands = 0 : i64, tpu.core_type = #tpu.core_type<tc>, window_params = [{transform_indices = @transform_0, window_bounds = array<i64: 1, 16, 16>}, {transform_indices = @transform_1, window_bounds = array<i64: 1, 16, 16>}, {transform_indices = @transform_2, window_bounds = array<i64: 1, 16, 16>}]} {
    %c0 = arith.constant 0 : index
    %c0_0 = arith.constant 0 : index
    %c0_1 = arith.constant 0 : index
    %0 = vector.load %arg2[%c0, %c0_0, %c0_1] : memref<1x16x16xf32, #tpu.memory_space<vmem>>, vector<1x16x16xf32>
    %1 = vector.shape_cast %0 : vector<1x16x16xf32> to vector<16x16xf32>
    %2 = tpu.iota {dimensions = array<i32: 0>} : vector<16x16xi32>
    %c1_i32 = arith.constant 1 : i32
    %3 = tpu.dynamic_rotate %1 by %c1_i32 dim 0 : vector<16x16xf32>, i32 -> vector<16x16xf32>
    %c1_i32_2 = arith.constant 1 : i32
    %4 = vector.broadcast %c1_i32_2 : i32 to vector<16x16xi32>
    %5 = arith.cmpi sge, %2, %4 : vector<16x16xi32>
    %cst = arith.constant 0.000000e+00 : f32
    %6 = vector.broadcast %cst : f32 to vector<16x16xf32>
    %7 = arith.select %5, %3, %6 : vector<16x16xi1>, vector<16x16xf32>
    %8 = arith.addf %1, %7 : vector<16x16xf32>
    %c2_i32 = arith.constant 2 : i32
    %9 = tpu.dynamic_rotate %8 by %c2_i32 dim 0 : vector<16x16xf32>, i32 -> vector<16x16xf32>
    %c2_i32_3 = arith.constant 2 : i32
    %10 = vector.broadcast %c2_i32_3 : i32 to vector<16x16xi32>
    %11 = arith.cmpi sge, %2, %10 : vector<16x16xi32>
    %cst_4 = arith.constant 0.000000e+00 : f32
    %12 = vector.broadcast %cst_4 : f32 to vector<16x16xf32>
    %13 = arith.select %11, %9, %12 : vector<16x16xi1>, vector<16x16xf32>
    %14 = arith.addf %8, %13 : vector<16x16xf32>
    %c4_i32 = arith.constant 4 : i32
    %15 = tpu.dynamic_rotate %14 by %c4_i32 dim 0 : vector<16x16xf32>, i32 -> vector<16x16xf32>
    %c4_i32_5 = arith.constant 4 : i32
    %16 = vector.broadcast %c4_i32_5 : i32 to vector<16x16xi32>
    %17 = arith.cmpi sge, %2, %16 : vector<16x16xi32>
    %cst_6 = arith.constant 0.000000e+00 : f32
    %18 = vector.broadcast %cst_6 : f32 to vector<16x16xf32>
    %19 = arith.select %17, %15, %18 : vector<16x16xi1>, vector<16x16xf32>
    %20 = arith.addf %14, %19 : vector<16x16xf32>
    %c8_i32 = arith.constant 8 : i32
    %21 = tpu.dynamic_rotate %20 by %c8_i32 dim 0 : vector<16x16xf32>, i32 -> vector<16x16xf32>
    %c8_i32_7 = arith.constant 8 : i32
    %22 = vector.broadcast %c8_i32_7 : i32 to vector<16x16xi32>
    %23 = arith.cmpi sge, %2, %22 : vector<16x16xi32>
    %cst_8 = arith.constant 0.000000e+00 : f32
    %24 = vector.broadcast %cst_8 : f32 to vector<16x16xf32>
    %25 = arith.select %23, %21, %24 : vector<16x16xi1>, vector<16x16xf32>
    %26 = arith.addf %20, %25 : vector<16x16xf32>
    %27 = vector.extract_strided_slice %26 {offsets = [15, 0], sizes = [1, 16], strides = [1, 1]} : vector<16x16xf32> to vector<1x16xf32>
    %c14_i32 = arith.constant 14 : i32
    %28 = tpu.dynamic_rotate %26 by %c14_i32 dim 0 : vector<16x16xf32>, i32 -> vector<16x16xf32>
    %c14_i32_9 = arith.constant 14 : i32
    %29 = vector.broadcast %c14_i32_9 : i32 to vector<16x16xi32>
    %30 = arith.cmpi sge, %2, %29 : vector<16x16xi32>
    %31 = vector.shape_cast %27 : vector<1x16xf32> to vector<1x16xf32>
    %32 = vector.broadcast %31 : vector<1x16xf32> to vector<16x16xf32>
    %33 = arith.select %30, %32, %28 : vector<16x16xi1>, vector<16x16xf32>
    %c3_i32 = arith.constant 3 : i32
    %34 = tpu.dynamic_rotate %26 by %c3_i32 dim 0 : vector<16x16xf32>, i32 -> vector<16x16xf32>
    %c3_i32_10 = arith.constant 3 : i32
    %35 = vector.broadcast %c3_i32_10 : i32 to vector<16x16xi32>
    %36 = arith.cmpi sge, %2, %35 : vector<16x16xi32>
    %cst_11 = arith.constant 0.000000e+00 : f32
    %37 = vector.broadcast %cst_11 : f32 to vector<16x16xf32>
    %38 = arith.select %36, %34, %37 : vector<16x16xi1>, vector<16x16xf32>
    %39 = vector.extract_strided_slice %1 {offsets = [0, 0], sizes = [1, 16], strides = [1, 1]} : vector<16x16xf32> to vector<1x16xf32>
    %40 = vector.extract_strided_slice %1 {offsets = [15, 0], sizes = [1, 16], strides = [1, 1]} : vector<16x16xf32> to vector<1x16xf32>
    %c2_i32_12 = arith.constant 2 : i32
    %41 = vector.broadcast %c2_i32_12 : i32 to vector<16x16xi32>
    %42 = arith.subi %41, %2 : vector<16x16xi32>
    %c0_i32 = arith.constant 0 : i32
    %43 = vector.broadcast %c0_i32 : i32 to vector<16x16xi32>
    %44 = arith.maxsi %42, %43 : vector<16x16xi32>
    %45 = arith.sitofp %44 : vector<16x16xi32> to vector<16x16xf32>
    %c2_i32_13 = arith.constant 2 : i32
    %46 = vector.broadcast %c2_i32_13 : i32 to vector<16x16xi32>
    %47 = arith.addi %2, %46 : vector<16x16xi32>
    %c15_i32 = arith.constant 15 : i32
    %48 = vector.broadcast %c15_i32 : i32 to vector<16x16xi32>
    %49 = arith.subi %47, %48 : vector<16x16xi32>
    %c0_i32_14 = arith.constant 0 : i32
    %50 = vector.broadcast %c0_i32_14 : i32 to vector<16x16xi32>
    %51 = arith.maxsi %49, %50 : vector<16x16xi32>
    %52 = arith.sitofp %51 : vector<16x16xi32> to vector<16x16xf32>
    %53 = arith.subf %33, %38 : vector<16x16xf32>
    %54 = vector.broadcast %39 : vector<1x16xf32> to vector<16x16xf32>
    %55 = arith.mulf %45, %54 : vector<16x16xf32>
    %56 = arith.addf %53, %55 : vector<16x16xf32>
    %57 = vector.broadcast %40 : vector<1x16xf32> to vector<16x16xf32>
    %58 = arith.mulf %52, %57 : vector<16x16xf32>
    %59 = arith.addf %56, %58 : vector<16x16xf32>
    %cst_15 = arith.constant 2.000000e-01 : f32
    %60 = vector.broadcast %cst_15 : f32 to vector<16x16xf32>
    %61 = arith.mulf %59, %60 : vector<16x16xf32>
    %62 = arith.subf %1, %61 : vector<16x16xf32>
    %c0_16 = arith.constant 0 : index
    %c0_17 = arith.constant 0 : index
    %c0_18 = arith.constant 0 : index
    %63 = vector.load %arg4[%c0_16, %c0_17, %c0_18] : memref<1x16x16xf32, #tpu.memory_space<vmem>>, vector<1x16x16xf32>
    %64 = vector.shape_cast %63 : vector<1x16x16xf32> to vector<16x16xf32>
    %65 = vector.shape_cast %61 : vector<16x16xf32> to vector<1x16x16xf32>
    tpu.vector_store %arg4[%c0_16, %c0_17, %c0_18], %65 {strides = array<i32>} : memref<1x16x16xf32, #tpu.memory_space<vmem>>, vector<1x16x16xf32>,
    %c0_19 = arith.constant 0 : index
    %c0_20 = arith.constant 0 : index
    %c0_21 = arith.constant 0 : index
    %66 = vector.load %arg3[%c0_19, %c0_20, %c0_21] : memref<1x16x16xf32, #tpu.memory_space<vmem>>, vector<1x16x16xf32>
    %67 = vector.shape_cast %66 : vector<1x16x16xf32> to vector<16x16xf32>
    %68 = vector.shape_cast %62 : vector<16x16xf32> to vector<1x16x16xf32>
    tpu.vector_store %arg3[%c0_19, %c0_20, %c0_21], %68 {strides = array<i32>} : memref<1x16x16xf32, #tpu.memory_space<vmem>>, vector<1x16x16xf32>,
    return
  }
  func.func @transform_0(%arg0: i32, %arg1: i32) -> (i32, i32, i32) {
    %c0_i32 = arith.constant 0 : i32
    %c0_i32_0 = arith.constant 0 : i32
    return %arg0, %c0_i32, %arg1 : i32, i32, i32
  }
  func.func @transform_1(%arg0: i32, %arg1: i32) -> (i32, i32, i32) {
    %c0_i32 = arith.constant 0 : i32
    %c0_i32_0 = arith.constant 0 : i32
    return %arg0, %c0_i32, %arg1 : i32, i32, i32
  }
  func.func @transform_2(%arg0: i32, %arg1: i32) -> (i32, i32, i32) {
    %c0_i32 = arith.constant 0 : i32
    %c0_i32_0 = arith.constant 0 : i32
    return %arg0, %c0_i32, %arg1 : i32, i32, i32
  }
}

</mosaic_0001>

<llo_original>
// kernel: tpu_custom_call.1
$region0: #{tpu_custom_call.1}
  #allocation0 [shape = 'u32[]', space=smem, size = 0x4, offset = 0x4, fixed_abs, tag = 'smem constant byte address 0x4 - core index']
  #allocation1 [shape = 'u32[144,128]{1,0:T(1,128)}', space=vmem, size = 0x12000, scoped, tag = 'internal scratch']
  %s0 = inlined_call_operand.hbm [shape: f32[1,16,16], index: 0, kind: input, shape index: {}]
  %s1 = inlined_call_operand.hbm [shape: f32[1,16,16], index: 1, kind: output, shape index: {0}]
  %s2 = inlined_call_operand.hbm [shape: f32[1,16,16], index: 2, kind: output, shape index: {1}]
  %3 = xla_tuple %s1, %s2
  %s4 = sld [smem:[#allocation0]]
  $region26: #{tpu_custom_call.1} parent=0
    _
  %s6 = ssub.s32 1, %s4
  %s7 = scalar_select 0, %s6, %s4
  $region1: #{tpu_custom_call.1} parent=0
    #allocation2 [shape = 'u8[8192]{0}', space=vmem, size = 0x2000, scoped, tag = 'input window, operand 0, single buffered']
    #allocation3 [shape = 's32[1]{0}', space=sflag, size = 0x4, scoped, tag = 'scoped memory for tpu_custom_call.1']
    #allocation4 [shape = 's32[1]{0}', space=sflag, size = 0x4, scoped, tag = 'scoped memory for tpu_custom_call.1']
    #allocation5 [shape = 'u8[8192]{0}', space=vmem, size = 0x2000, scoped, tag = 'output window, operand 0, single buffered']
    #allocation6 [shape = 'u8[8192]{0}', space=vmem, size = 0x2000, scoped, tag = 'output window, operand 1, single buffered']
    #allocation7 [shape = 's32[1]{0}', space=sflag, size = 0x4, scoped, tag = 'scoped memory for tpu_custom_call.1']
    %8 = vsyncpa [#allocation3], 0
    %9 = vsyncpa [#allocation4], 0
    %10 = vsyncpa [#allocation7], 0
    // Predicated region
    $region2: #{tpu_custom_call.1} parent=1 // pred_check
      _
    $region3: #{tpu_custom_call.1} parent=1 // pred_check_branch
      %12 = sbr.rel (0) target = $region5
    $region4: #{tpu_custom_call.1} parent=1 // pred_region
      %s14 = ssub.s32 256, 256
      %15 = vsyncadd [#allocation3], %s14
      %s16 = sshll.u32 [#allocation2], 4
      %s17 = int_to_ptr.vmem [resolvable:$true] %s16
      %22 = dma.hbm_to_vmem [thread:$0]  %s0, 256, %s17, [#allocation3], 128, 128, 8
    $region5: #{tpu_custom_call.1} parent=1 // pred_fallthru
      _
    // Predicated region
    $region6: #{tpu_custom_call.1} parent=1 // pred_check
      _
    $region7: #{tpu_custom_call.1} parent=1 // pred_check_branch
      %24 = sbr.rel (0) target = $region9
    $region8: #{tpu_custom_call.1} parent=1 // pred_region
      %25 = dma.done [#allocation3], 256
    $region9: #{tpu_custom_call.1} parent=1 // pred_fallthru
      _
    %v26 = vld [vmem:[#allocation2] sm:$0xff]
    %v27 = vld [vmem:[#allocation2 + $0x8] sm:$0xff]
    %v28 = vlaneseq
    %v29 = vshrl.u32 %v28, 7
    %v30 = vadd.s32 %v29, 8
    %v31 = vrot.slane %v26, 7
    %v32 = vrot.slane %v27, 7
    %vm33 = vcmp.lt.s32.totalorder %v29, 1
    %v34 = vsel %vm33, %v31, %v32
    %v35 = vsel %vm33, %v32, %v31
    %vm36 = vcmp.ge.s32.totalorder %v29, 1
    %vm37 = vcmp.ge.s32.totalorder %v30, 1
    %v38 = vsel %vm36, %v35, 0.0
    %v39 = vsel %vm37, %v34, 0.0
    %v40 = vadd.f32 %v26, %v38
    %v41 = vadd.f32 %v27, %v39
    %v42 = vrot.slane %v40, 6
    %v43 = vrot.slane %v41, 6
    %vm44 = vcmp.lt.s32.totalorder %v29, 2
    %v45 = vsel %vm44, %v42, %v43
    %v46 = vsel %vm44, %v43, %v42
    %vm47 = vcmp.ge.s32.totalorder %v29, 2
    %vm48 = vcmp.ge.s32.totalorder %v30, 2
    %v49 = vsel %vm47, %v46, 0.0
    %v50 = vsel %vm48, %v45, 0.0
    %v51 = vadd.f32 %v40, %v49
    %v52 = vadd.f32 %v41, %v50
    %v53 = vrot.slane %v51, 4
    %v54 = vrot.slane %v52, 4
    %vm55 = vcmp.lt.s32.totalorder %v29, 4
    %v56 = vsel %vm55, %v53, %v54
    %v57 = vsel %vm55, %v54, %v53
    %vm58 = vcmp.ge.s32.totalorder %v29, 4
    %vm59 = vcmp.ge.s32.totalorder %v30, 4
    %v60 = vsel %vm58, %v57, 0.0
    %v61 = vsel %vm59, %v56, 0.0
    %v62 = vadd.f32 %v51, %v60
    %v63 = vadd.f32 %v52, %v61
    %vm64 = vcmp.ge.s32.totalorder %v29, 8
    %vm65 = vcmp.ge.s32.totalorder %v30, 8
    %v66 = vsel %vm64, %v63, 0.0
    %v67 = vsel %vm65, %v62, 0.0
    %v68 = vadd.f32 %v62, %v66
    %v69 = vadd.f32 %v63, %v67
    %v70 = vrot.slane %v68, 2
    %v71 = vrot.slane %v69, 2
    %vm72 = vcmp.lt.s32.totalorder %v29, 6
    %v73 = vsel %vm72, %v70, %v71
    %v74 = vsel %vm72, %v71, %v70
    %vm75 = vcmp.ge.s32.totalorder %v29, 14
    %vm76 = vcmp.ge.s32.totalorder %v30, 14
    %v77 = vlaneseq
    %v78 = vshrl.u32 %v77, 7
    %v79 = vsub.s32 7, %v78
    %v80 = vrot.slane %v69, %v79
    %v81 = vsel %vm75, %v80, %v73
    %v82 = vsel %vm76, %v80, %v74
    %v83 = vrot.slane %v68, 5
    %v84 = vrot.slane %v69, 5
    %vm85 = vcmp.lt.s32.totalorder %v29, 3
    %v86 = vsel %vm85, %v83, %v84
    %v87 = vsel %vm85, %v84, %v83
    %vm88 = vcmp.ge.s32.totalorder %v29, 3
    %vm89 = vcmp.ge.s32.totalorder %v30, 3
    %v90 = vsel %vm88, %v87, 0.0
    %v91 = vsel %vm89, %v86, 0.0
    %v92 = vsub.s32 2, %v29
    %v93 = vsub.s32 2, %v30
    %vm94 = vcmp.gt.s32.totalorder %v92, 0
    %v95 = vsel %vm94, %v92, 0
    %vm96 = vcmp.gt.s32.totalorder %v93, 0
    %v97 = vsel %vm96, %v93, 0
    %v98 = vcvt.s32.f32 %v95
    %v99 = vcvt.s32.f32 %v97
    %v100 = vadd.s32 %v29, 2
    %v101 = vadd.s32 %v30, 2
    %v102 = vsub.s32 %v100, 15
    %v103 = vsub.s32 %v101, 15
    %vm104 = vcmp.gt.s32.totalorder %v102, 0
    %v105 = vsel %vm104, %v102, 0
    %vm106 = vcmp.gt.s32.totalorder %v103, 0
    %v107 = vsel %vm106, %v103, 0
    %v108 = vcvt.s32.f32 %v105
    %v109 = vcvt.s32.f32 %v107
    %v110 = vsub.f32 %v81, %v90
    %v111 = vsub.f32 %v82, %v91
    %v112 = vlaneseq
    %v113 = vshrl.u32 %v112, 7
    %v114 = vsub.s32 0, %v113
    %v115 = vrot.slane %v26, %v114
    %v116 = vmul.f32 %v98, %v115
    %v117 = vmul.f32 %v99, %v115
    %v118 = vadd.f32 %v110, %v116
    %v119 = vadd.f32 %v111, %v117
    %v120 = vlaneseq
    %v121 = vshrl.u32 %v120, 7
    %v122 = vsub.s32 7, %v121
    %v123 = vrot.slane %v27, %v122
    %v124 = vmul.f32 %v108, %v123
    %v125 = vmul.f32 %v109, %v123
    %v126 = vadd.f32 %v118, %v124
    %v127 = vadd.f32 %v119, %v125
    %v128 = vmul.f32 %v126, 0.2
    %v129 = vmul.f32 %v127, 0.2
    %v130 = vsub.f32 %v26, %v128
    %v131 = vsub.f32 %v27, %v129
    %vm132 = vcmask 130048
    %133 = vst.msk [vmem:[#allocation6] sm:$0xff] %vm132, %v128
    %134 = vst.msk [vmem:[#allocation6 + $0x8] sm:$0xff] %vm132, %v129
    %135 = vst.msk [vmem:[#allocation5] sm:$0xff] %vm132, %v130
    %136 = vst.msk [vmem:[#allocation5 + $0x8] sm:$0xff] %vm132, %v131
    // Predicated region
    $region10: #{tpu_custom_call.1} parent=1 // pred_check
      _
    $region11: #{tpu_custom_call.1} parent=1 // pred_check_branch
      %138 = sbr.rel (0) target = $region13
    $region12: #{tpu_custom_call.1} parent=1 // pred_region
      %s140 = ssub.s32 256, 256
      %141 = vsyncadd [#allocation4], %s140
      %s142 = sshll.u32 [#allocation5], 4
      %s143 = int_to_ptr.vmem [resolvable:$true] %s142
      %148 = dma.vmem_to_hbm [thread:$0]  %s143, 256, %s1, [#allocation4], 128, 128, 8
    $region13: #{tpu_custom_call.1} parent=1 // pred_fallthru
      _
    // Predicated region
    $region14: #{tpu_custom_call.1} parent=1 // pred_check
      _
    $region15: #{tpu_custom_call.1} parent=1 // pred_check_branch
      %150 = sbr.rel (0) target = $region17
    $region16: #{tpu_custom_call.1} parent=1 // pred_region
      %s152 = ssub.s32 256, 256
      %153 = vsyncadd [#allocation7], %s152
      %s154 = sshll.u32 [#allocation6], 4
      %s155 = int_to_ptr.vmem [resolvable:$true] %s154
      %160 = dma.vmem_to_hbm [thread:$0]  %s155, 256, %s2, [#allocation7], 128, 128, 8
    $region17: #{tpu_custom_call.1} parent=1 // pred_fallthru
      _
    // Predicated region
    $region18: #{tpu_custom_call.1} parent=1 // pred_check
      _
    $region19: #{tpu_custom_call.1} parent=1 // pred_check_branch
      %162 = sbr.rel (0) target = $region21
    $region20: #{tpu_custom_call.1} parent=1 // pred_region
      %163 = dma.done [#allocation4], 256
    $region21: #{tpu_custom_call.1} parent=1 // pred_fallthru
      _
    // Predicated region
    $region22: #{tpu_custom_call.1} parent=1 // pred_check
      _
    $region23: #{tpu_custom_call.1} parent=1 // pred_check_branch
      %165 = sbr.rel (0) target = $region25
    $region24: #{tpu_custom_call.1} parent=1 // pred_region
      %166 = dma.done [#allocation7], 256
    $region25: #{tpu_custom_call.1} parent=1 // pred_fallthru
      _
    %167 = vsyncpa [#allocation3], 1
    %168 = vsyncpa [#allocation4], 1
    %169 = vsyncpa [#allocation7], 1

</llo_original>
